<compile_context>
chip_gen: v7x
topology: tpu7x:2x2x1
jax: 0.10.0
libtpu: 0.0.40
codegen_flags: <defaults>
</compile_context>

<pallas_src>
import functools
import math

import jax
import jax.numpy as jnp
from jax.experimental import pallas as pl
from jax.experimental.pallas import tpu as pltpu


def _attention_kernel(g_ref, x_ref, w_ref, p_ref, o_ref, *, f_l, use_mxu,
                      bf16_dots):
    """One (channels, spatial_tile) slab of the attention gate.

    g_ref : (F_l, TS)           gating signal (channels on sublanes, spatial on lanes)
    x_ref : (F_g, TS)           skip connection
    w_ref : (F_int, F_l+F_g)    folded [W_g | W_x] 1x1x1 conv weights (f32)
    p_ref : (F_int, 3)          col0 = b_g + b_x, col1 = W_psi, col2 = b_psi (bcast)
    o_ref : (F_g, TS)           gated skip connection
    """
    g = g_ref[...]
    x = x_ref[...]
    xf = x.astype(jnp.float32)
    w = w_ref[...]
    wg = w[:, :f_l]
    wx = w[:, f_l:]
    f_g = x.shape[0]

    if use_mxu:
        # Branch 1x1x1 convs on the MXU (vector-extended slot) -> VALU slots
        # stay free.  bf16 operands when the activations are bf16.
        if bf16_dots:
            acc = (jnp.dot(wg.astype(jnp.bfloat16), g.astype(jnp.bfloat16),
                           preferred_element_type=jnp.float32)
                   + jnp.dot(wx.astype(jnp.bfloat16), x.astype(jnp.bfloat16),
                             preferred_element_type=jnp.float32))
        else:
            acc = (jnp.dot(wg, g.astype(jnp.float32),
                           preferred_element_type=jnp.float32)
                   + jnp.dot(wx, xf, preferred_element_type=jnp.float32))
    else:
        # Tiny channel counts on v5e/v6e (HBM-bound there): fused W_g/W_x
        # convs as VPU broadcast-MACs (outer-product accumulate), avoiding
        # K<=8 contractions through the systolic array.
        gf = g.astype(jnp.float32)
        acc = wg[:, 0:1] * gf[0:1, :]
        for k in range(1, f_l):
            acc = acc + wg[:, k:k + 1] * gf[k:k + 1, :]
        for k in range(f_g):
            acc = acc + wx[:, k:k + 1] * xf[k:k + 1, :]

    b = p_ref[:, 0:1]                 # (F_int, 1)  fused branch bias (b_g + b_x)
    wp = p_ref[:, 1:2]                # (F_int, 1)  psi conv weight
    bp = p_ref[0:1, 2:3]              # (1, 1)      psi bias

    a = jnp.maximum(acc + b, 0.0)                                   # (F_int, TS)
    # psi conv = weighted sum over the F_int sublanes (VPU mul + XLU reduce),
    # sigmoid with exp + approximate reciprocal routed to the EUP.
    z = jnp.sum(a * wp, axis=0, keepdims=True) + bp                 # (1, TS)
    psi = pl.reciprocal(1.0 + jnp.exp(-z), approx=True)             # (1, TS)

    # Gate the skip connection; (1, TS) broadcasts over the F_g sublanes.
    # Lane-dense store: TS is a multiple of 128 (only a ragged tail block,
    # if any, uses a masked store).
    o_ref[...] = (xf * psi).astype(o_ref.dtype)


def _device_kind():
    try:
        return jax.devices()[0].device_kind.lower()
    except Exception:
        return ""


def _prefers_mxu_for_small_k():
    # On v7x the 3.2 TB/s HBM makes the VPU broadcast-MAC chain the binding
    # slot before memory; route tiny-K contractions to the MXU there.
    kind = _device_kind()
    return ("v7" in kind) or ("7x" in kind)


def _vmem_budget_bytes():
    # Stay under the scoped-VMEM defaults (16 MiB on v4/v5e, 32 MiB on
    # v6e/v7x) with headroom for params / internal scratch.
    kind = _device_kind()
    if ("v5" in kind) or ("v4" in kind):
        return 12 << 20
    return 24 << 20


def _pick_spatial_tile(S, n_batch, f_l, f_g, f_int, in_itemsize, out_itemsize):
    """Largest lane-dense (multiple-of-128) spatial tile that
      * keeps double-buffered blocks + f32 intermediates under the per-
        generation VMEM budget, and
      * leaves >= ~4 grid steps total so both v7x TensorCores get work and
        the pipeline always has a next block to prefetch.
    """
    if S <= 128:
        return S
    budget = _vmem_budget_bytes()
    # 2x-buffered pipelined blocks (g, x in; out) + in-kernel f32 intermediates.
    per_pos = (2 * ((f_l + f_g) * in_itemsize + f_g * out_itemsize)
               + (2 * f_int + f_g + 2) * 4)
    ts_budget = (budget // per_pos) // 128 * 128
    ts_budget = max(128, min(ts_budget, 128 * 1024))
    min_spatial_steps = max(1, -(-4 // max(n_batch, 1)))
    ts_steps = -(-max(128, -(-S // min_spatial_steps)) // 128) * 128
    s_ceil = -(-S // 128) * 128
    return max(128, min(ts_budget, ts_steps, s_ceil))


def attention_block_pallas(g, x, wg, bg, wx, bx, wp, bp, *, spatial_tile=None):
    """Attention_block forward (eval-mode BN folded into the convs).

    g : (N, F_l, D, H, W)   x : (N, F_g, D, H, W)       (NCDHW, like PyTorch)
    wg: (F_int, F_l)  bg: (F_int,)   -- W_g 1x1x1 conv (+ folded BN)
    wx: (F_int, F_g)  bx: (F_int,)   -- W_x 1x1x1 conv (+ folded BN)
    wp: (1, F_int)    bp: (1,)       -- psi 1x1x1 conv (+ folded BN)
    """
    N, F_l = g.shape[0], g.shape[1]
    F_g = x.shape[1]
    spatial = g.shape[2:]
    assert x.shape[2:] == spatial and x.shape[0] == N
    S = math.prod(spatial)
    F_int = wg.shape[0]

    # NCDHW -> (N, C, S): free reshape (spatial already contiguous).  Spatial
    # positions land on the 128-lane axis -> lane-dense loads/stores.
    g3 = g.reshape(N, F_l, S)
    x3 = x.reshape(N, F_g, S)

    ts = spatial_tile if spatial_tile is not None else _pick_spatial_tile(
        S, N, F_l, F_g, F_int, g.dtype.itemsize, x.dtype.itemsize)
    grid = (N, pl.cdiv(S, ts))   # ragged tail handled by Pallas (masked store)

    # Merge the small parameter operands: one weight slab + one (F_int, 3)
    # param slab -> fewer DMAs and double-buffers per call.
    w_cat = jnp.concatenate([wg, wx], axis=1).astype(jnp.float32)  # (F_int, F_l+F_g)
    params = jnp.concatenate(
        [(bg + bx).astype(jnp.float32).reshape(F_int, 1),
         wp.astype(jnp.float32).reshape(F_int, 1),
         jnp.broadcast_to(bp.astype(jnp.float32).reshape(1, 1), (F_int, 1))],
        axis=1)                                                    # (F_int, 3)

    use_mxu = (F_l + F_g > 16) or _prefers_mxu_for_small_k()
    bf16_dots = use_mxu and (g.dtype == jnp.bfloat16 or x.dtype == jnp.bfloat16)

    kernel = functools.partial(_attention_kernel, f_l=F_l, use_mxu=use_mxu,
                               bf16_dots=bf16_dots)

    out3 = pl.pallas_call(
        kernel,
        out_shape=jax.ShapeDtypeStruct((N, F_g, S), x.dtype),
        grid_spec=pltpu.PrefetchScalarGridSpec(
            num_scalar_prefetch=0,
            grid=grid,
            in_specs=[
                pl.BlockSpec((None, F_l, ts), lambda n, s: (n, 0, s)),   # g rows
                pl.BlockSpec((None, F_g, ts), lambda n, s: (n, 0, s)),   # x rows
                pl.BlockSpec((F_int, F_l + F_g), lambda n, s: (0, 0)),   # [W_g|W_x]
                pl.BlockSpec((F_int, 3), lambda n, s: (0, 0)),           # biases+psi
            ],
            out_specs=pl.BlockSpec((None, F_g, ts), lambda n, s: (n, 0, s)),
        ),
        # Both grid axes are independent -> shard across TensorCores (v7x).
        compiler_params=pltpu.CompilerParams(
            dimension_semantics=("parallel", "parallel")),
    )(g3, x3, w_cat, params)

    return out3.reshape(N, F_g, *spatial)


def _fold_bn(w, b, gamma, beta, mean, var, eps=1e-5):
    """Fold eval-mode BatchNorm3d into a (Cout, Cin) 1x1x1 conv weight/bias."""
    scale = gamma / jnp.sqrt(var + eps)          # (Cout,)
    return w * scale[:, None], (b - mean) * scale + beta


def _reference(g, x, wg, bg, wx, bx, wp, bp):
    """Pure-JAX reference (NCDHW, same folded weights)."""
    g1 = jnp.einsum('oc,ncdhw->nodhw', wg, g) + bg[None, :, None, None, None]
    x1 = jnp.einsum('oc,ncdhw->nodhw', wx, x) + bx[None, :, None, None, None]
    a = jnp.maximum(g1 + x1, 0.0)
    z = jnp.einsum('oc,ncdhw->nodhw', wp, a) + bp[None, :, None, None, None]
    psi = 1.0 / (1.0 + jnp.exp(-z))
    return x * psi


if __name__ == "__main__":
    key = jax.random.PRNGKey(0)
    ks = jax.random.split(key, 24)

    # ---------------------------------------------------------------- test 1
    # Module config Attention_block(F_g, F_l, F_int) with tiny channels,
    # f32 activations -> VPU broadcast-MAC path (MXU path on v7x).
    F_g, F_l, F_int = 4, 4, 8
    N, Dd, Hh, Ww = 2, 4, 8, 8             # S = 4*8*8 = 256 spatial positions

    wg_raw = jax.random.normal(ks[0], (F_int, F_l), jnp.float32) * 0.1
    bg_raw = jax.random.normal(ks[1], (F_int,), jnp.float32) * 0.1
    wx_raw = jax.random.normal(ks[2], (F_int, F_g), jnp.float32) * 0.1
    bx_raw = jax.random.normal(ks[3], (F_int,), jnp.float32) * 0.1
    wp_raw = jax.random.normal(ks[4], (1, F_int), jnp.float32) * 0.1
    bp_raw = jax.random.normal(ks[5], (1,), jnp.float32) * 0.1

    bn_g = (1.0 + 0.1 * jax.random.normal(ks[6], (F_int,)),
            0.1 * jax.random.normal(ks[7], (F_int,)),
            0.1 * jax.random.normal(ks[8], (F_int,)),
            1.0 + 0.1 * jnp.abs(jax.random.normal(ks[9], (F_int,))))
    bn_x = (1.0 + 0.1 * jax.random.normal(ks[10], (F_int,)),
            0.1 * jax.random.normal(ks[11], (F_int,)),
            0.1 * jax.random.normal(ks[12], (F_int,)),
            1.0 + 0.1 * jnp.abs(jax.random.normal(ks[13], (F_int,))))
    bn_p = (jnp.ones((1,)), jnp.zeros((1,)), jnp.zeros((1,)), jnp.ones((1,)))

    wg, bg = _fold_bn(wg_raw, bg_raw, *bn_g)
    wx, bx = _fold_bn(wx_raw, bx_raw, *bn_x)
    wp, bp = _fold_bn(wp_raw, bp_raw, *bn_p)

    g_in = jax.random.normal(ks[14], (N, F_l, Dd, Hh, Ww), jnp.float32)
    x_in = jax.random.normal(ks[15], (N, F_g, Dd, Hh, Ww), jnp.float32)

    out = jax.block_until_ready(
        attention_block_pallas(g_in, x_in, wg, bg, wx, bx, wp, bp))
    ref = _reference(g_in, x_in, wg, bg, wx, bx, wp, bp)
    assert out.shape == (N, F_g, Dd, Hh, Ww)
    # Tolerance accounts for the EUP approximate reciprocal in the sigmoid.
    assert jnp.allclose(out, ref, atol=5e-3, rtol=5e-3)

    # ---------------------------------------------------------------- test 2
    # Larger channel counts with bf16 activations -> MXU bf16-dot path.
    F_g2, F_l2, F_int2 = 32, 32, 16
    N2, D2, H2, W2 = 1, 4, 8, 8

    wg2 = jax.random.normal(ks[16], (F_int2, F_l2), jnp.float32) * 0.1
    bg2 = jax.random.normal(ks[17], (F_int2,), jnp.float32) * 0.1
    wx2 = jax.random.normal(ks[18], (F_int2, F_g2), jnp.float32) * 0.1
    bx2 = jax.random.normal(ks[19], (F_int2,), jnp.float32) * 0.1
    wp2 = jax.random.normal(ks[20], (1, F_int2), jnp.float32) * 0.1
    bp2 = jax.random.normal(ks[21], (1,), jnp.float32) * 0.1
    g2 = jax.random.normal(ks[22], (N2, F_l2, D2, H2, W2)).astype(jnp.bfloat16)
    x2 = jax.random.normal(ks[23], (N2, F_g2, D2, H2, W2)).astype(jnp.bfloat16)

    out2 = jax.block_until_ready(
        attention_block_pallas(g2, x2, wg2, bg2, wx2, bx2, wp2, bp2))
    # Reference mirrors the kernel's bf16 rounding of the branch-conv weights.
    ref2 = _reference(g2.astype(jnp.float32), x2.astype(jnp.float32),
                      wg2.astype(jnp.bfloat16).astype(jnp.float32), bg2,
                      wx2.astype(jnp.bfloat16).astype(jnp.float32), bx2,
                      wp2, bp2)
    assert out2.shape == (N2, F_g2, D2, H2, W2)
    assert jnp.allclose(out2.astype(jnp.float32), ref2, atol=3e-2, rtol=3e-2)

    print("KERNEL_OK")
</pallas_src>

<mosaic_0001>
module attributes {stable_mosaic.version = 11 : i64} {
  func.func @_attention_kernel(%arg0: i32, %arg1: i32, %arg2: memref<1x4x128xf32, #tpu.memory_space<vmem>>, %arg3: memref<1x4x128xf32, #tpu.memory_space<vmem>>, %arg4: memref<8x8xf32, #tpu.memory_space<vmem>>, %arg5: memref<8x3xf32, #tpu.memory_space<vmem>>, %arg6: memref<1x4x128xf32, #tpu.memory_space<vmem>>) attributes {dimension_semantics = [#tpu.dimension_semantics<parallel>, #tpu.dimension_semantics<parallel>], iteration_bounds = array<i64: 2, 2>, scalar_prefetch = 0 : i64, scratch_operands = 0 : i64, tpu.core_type = #tpu.core_type<tc>, window_params = [{transform_indices = @transform_0, window_bounds = array<i64: 1, 4, 128>}, {transform_indices = @transform_1, window_bounds = array<i64: 1, 4, 128>}, {pipeline_mode = #tpu.pipeline_mode<synchronous>, transform_indices = @transform_2, window_bounds = array<i64: 8, 8>}, {pipeline_mode = #tpu.pipeline_mode<synchronous>, transform_indices = @transform_3, window_bounds = array<i64: 8, 3>}, {transform_indices = @transform_4, window_bounds = array<i64: 1, 4, 128>}]} {
    %c0 = arith.constant 0 : index
    %c0_0 = arith.constant 0 : index
    %c0_1 = arith.constant 0 : index
    %0 = vector.load %arg2[%c0, %c0_0, %c0_1] : memref<1x4x128xf32, #tpu.memory_space<vmem>>, vector<1x4x128xf32>
    %1 = vector.shape_cast %0 : vector<1x4x128xf32> to vector<4x128xf32>
    %c0_2 = arith.constant 0 : index
    %c0_3 = arith.constant 0 : index
    %c0_4 = arith.constant 0 : index
    %2 = vector.load %arg3[%c0_2, %c0_3, %c0_4] : memref<1x4x128xf32, #tpu.memory_space<vmem>>, vector<1x4x128xf32>
    %3 = vector.shape_cast %2 : vector<1x4x128xf32> to vector<4x128xf32>
    %c0_5 = arith.constant 0 : index
    %c0_6 = arith.constant 0 : index
    %4 = vector.load %arg4[%c0_5, %c0_6] : memref<8x8xf32, #tpu.memory_space<vmem>>, vector<8x8xf32>
    %5 = vector.extract_strided_slice %4 {offsets = [0, 0], sizes = [8, 4], strides = [1, 1]} : vector<8x8xf32> to vector<8x4xf32>
    %6 = vector.extract_strided_slice %4 {offsets = [0, 4], sizes = [8, 4], strides = [1, 1]} : vector<8x8xf32> to vector<8x4xf32>
    %7 = vector.extract_strided_slice %5 {offsets = [0, 0], sizes = [8, 1], strides = [1, 1]} : vector<8x4xf32> to vector<8x1xf32>
    %8 = vector.extract_strided_slice %1 {offsets = [0, 0], sizes = [1, 128], strides = [1, 1]} : vector<4x128xf32> to vector<1x128xf32>
    %9 = vector.broadcast %7 : vector<8x1xf32> to vector<8x128xf32>
    %10 = vector.broadcast %8 : vector<1x128xf32> to vector<8x128xf32>
    %11 = arith.mulf %9, %10 : vector<8x128xf32>
    %12 = vector.extract_strided_slice %5 {offsets = [0, 1], sizes = [8, 1], strides = [1, 1]} : vector<8x4xf32> to vector<8x1xf32>
    %13 = vector.extract_strided_slice %1 {offsets = [1, 0], sizes = [1, 128], strides = [1, 1]} : vector<4x128xf32> to vector<1x128xf32>
    %14 = vector.broadcast %12 : vector<8x1xf32> to vector<8x128xf32>
    %15 = vector.broadcast %13 : vector<1x128xf32> to vector<8x128xf32>
    %16 = arith.mulf %14, %15 : vector<8x128xf32>
    %17 = arith.addf %11, %16 : vector<8x128xf32>
    %18 = vector.extract_strided_slice %5 {offsets = [0, 2], sizes = [8, 1], strides = [1, 1]} : vector<8x4xf32> to vector<8x1xf32>
    %19 = vector.extract_strided_slice %1 {offsets = [2, 0], sizes = [1, 128], strides = [1, 1]} : vector<4x128xf32> to vector<1x128xf32>
    %20 = vector.broadcast %18 : vector<8x1xf32> to vector<8x128xf32>
    %21 = vector.broadcast %19 : vector<1x128xf32> to vector<8x128xf32>
    %22 = arith.mulf %20, %21 : vector<8x128xf32>
    %23 = arith.addf %17, %22 : vector<8x128xf32>
    %24 = vector.extract_strided_slice %5 {offsets = [0, 3], sizes = [8, 1], strides = [1, 1]} : vector<8x4xf32> to vector<8x1xf32>
    %25 = vector.extract_strided_slice %1 {offsets = [3, 0], sizes = [1, 128], strides = [1, 1]} : vector<4x128xf32> to vector<1x128xf32>
    %26 = vector.broadcast %24 : vector<8x1xf32> to vector<8x128xf32>
    %27 = vector.broadcast %25 : vector<1x128xf32> to vector<8x128xf32>
    %28 = arith.mulf %26, %27 : vector<8x128xf32>
    %29 = arith.addf %23, %28 : vector<8x128xf32>
    %30 = vector.extract_strided_slice %6 {offsets = [0, 0], sizes = [8, 1], strides = [1, 1]} : vector<8x4xf32> to vector<8x1xf32>
    %31 = vector.extract_strided_slice %3 {offsets = [0, 0], sizes = [1, 128], strides = [1, 1]} : vector<4x128xf32> to vector<1x128xf32>
    %32 = vector.broadcast %30 : vector<8x1xf32> to vector<8x128xf32>
    %33 = vector.broadcast %31 : vector<1x128xf32> to vector<8x128xf32>
    %34 = arith.mulf %32, %33 : vector<8x128xf32>
    %35 = arith.addf %29, %34 : vector<8x128xf32>
    %36 = vector.extract_strided_slice %6 {offsets = [0, 1], sizes = [8, 1], strides = [1, 1]} : vector<8x4xf32> to vector<8x1xf32>
    %37 = vector.extract_strided_slice %3 {offsets = [1, 0], sizes = [1, 128], strides = [1, 1]} : vector<4x128xf32> to vector<1x128xf32>
    %38 = vector.broadcast %36 : vector<8x1xf32> to vector<8x128xf32>
    %39 = vector.broadcast %37 : vector<1x128xf32> to vector<8x128xf32>
    %40 = arith.mulf %38, %39 : vector<8x128xf32>
    %41 = arith.addf %35, %40 : vector<8x128xf32>
    %42 = vector.extract_strided_slice %6 {offsets = [0, 2], sizes = [8, 1], strides = [1, 1]} : vector<8x4xf32> to vector<8x1xf32>
    %43 = vector.extract_strided_slice %3 {offsets = [2, 0], sizes = [1, 128], strides = [1, 1]} : vector<4x128xf32> to vector<1x128xf32>
    %44 = vector.broadcast %42 : vector<8x1xf32> to vector<8x128xf32>
    %45 = vector.broadcast %43 : vector<1x128xf32> to vector<8x128xf32>
    %46 = arith.mulf %44, %45 : vector<8x128xf32>
    %47 = arith.addf %41, %46 : vector<8x128xf32>
    %48 = vector.extract_strided_slice %6 {offsets = [0, 3], sizes = [8, 1], strides = [1, 1]} : vector<8x4xf32> to vector<8x1xf32>
    %49 = vector.extract_strided_slice %3 {offsets = [3, 0], sizes = [1, 128], strides = [1, 1]} : vector<4x128xf32> to vector<1x128xf32>
    %50 = vector.broadcast %48 : vector<8x1xf32> to vector<8x128xf32>
    %51 = vector.broadcast %49 : vector<1x128xf32> to vector<8x128xf32>
    %52 = arith.mulf %50, %51 : vector<8x128xf32>
    %53 = arith.addf %47, %52 : vector<8x128xf32>
    %c0_7 = arith.constant 0 : index
    %c0_8 = arith.constant 0 : index
    %54 = vector.load %arg5[%c0_7, %c0_8] : memref<8x3xf32, #tpu.memory_space<vmem>>, vector<8x1xf32>
    %c0_9 = arith.constant 0 : index
    %c1 = arith.constant 1 : index
    %55 = vector.load %arg5[%c0_9, %c1] : memref<8x3xf32, #tpu.memory_space<vmem>>, vector<8x1xf32>
    %c0_10 = arith.constant 0 : index
    %c2 = arith.constant 2 : index
    %56 = vector.load %arg5[%c0_10, %c2] : memref<8x3xf32, #tpu.memory_space<vmem>>, vector<1x1xf32>
    %57 = vector.broadcast %54 : vector<8x1xf32> to vector<8x128xf32>
    %58 = arith.addf %53, %57 : vector<8x128xf32>
    %cst = arith.constant 0.000000e+00 : f32
    %59 = vector.broadcast %cst : f32 to vector<8x128xf32>
    %60 = arith.maximumf %58, %59 : vector<8x128xf32>
    %61 = vector.broadcast %55 : vector<8x1xf32> to vector<8x128xf32>
    %62 = arith.mulf %60, %61 : vector<8x128xf32>
    %cst_11 = arith.constant dense<0.000000e+00> : vector<128xf32>
    %63 = vector.multi_reduction <add>, %62, %cst_11 [0] : vector<8x128xf32> to vector<128xf32>
    %64 = vector.shape_cast %63 : vector<128xf32> to vector<1x128xf32>
    %65 = vector.broadcast %56 : vector<1x1xf32> to vector<1x128xf32>
    %66 = arith.addf %64, %65 : vector<1x128xf32>
    %cst_12 = arith.constant 0.000000e+00 : f32
    %67 = vector.broadcast %cst_12 : f32 to vector<1x128xf32>
    %68 = arith.subf %67, %66 : vector<1x128xf32>
    %69 = math.exp %68 : vector<1x128xf32>
    %cst_13 = arith.constant 1.000000e+00 : f32
    %70 = vector.broadcast %cst_13 : f32 to vector<1x128xf32>
    %71 = arith.addf %70, %69 : vector<1x128xf32>
    %72 = tpu.reciprocal %71 {approx = true} : vector<1x128xf32> -> vector<1x128xf32>
    %73 = vector.broadcast %72 : vector<1x128xf32> to vector<4x128xf32>
    %74 = arith.mulf %3, %73 : vector<4x128xf32>
    %c0_14 = arith.constant 0 : index
    %c0_15 = arith.constant 0 : index
    %c0_16 = arith.constant 0 : index
    %75 = vector.load %arg6[%c0_14, %c0_15, %c0_16] : memref<1x4x128xf32, #tpu.memory_space<vmem>>, vector<1x4x128xf32>
    %76 = vector.shape_cast %75 : vector<1x4x128xf32> to vector<4x128xf32>
    %77 = vector.shape_cast %74 : vector<4x128xf32> to vector<1x4x128xf32>
    tpu.vector_store %arg6[%c0_14, %c0_15, %c0_16], %77 {strides = array<i32>} : memref<1x4x128xf32, #tpu.memory_space<vmem>>, vector<1x4x128xf32>,
    return
  }
  func.func @transform_0(%arg0: i32, %arg1: i32) -> (i32, i32, i32) {
    %c0_i32 = arith.constant 0 : i32
    %c0_i32_0 = arith.constant 0 : i32
    return %arg0, %c0_i32, %arg1 : i32, i32, i32
  }
  func.func @transform_1(%arg0: i32, %arg1: i32) -> (i32, i32, i32) {
    %c0_i32 = arith.constant 0 : i32
    %c0_i32_0 = arith.constant 0 : i32
    return %arg0, %c0_i32, %arg1 : i32, i32, i32
  }
  func.func @transform_2(%arg0: i32, %arg1: i32) -> (i32, i32) {
    %c0_i32 = arith.constant 0 : i32
    %c0_i32_0 = arith.constant 0 : i32
    %c0_i32_1 = arith.constant 0 : i32
    return %c0_i32, %c0_i32_0 : i32, i32
  }
  func.func @transform_3(%arg0: i32, %arg1: i32) -> (i32, i32) {
    %c0_i32 = arith.constant 0 : i32
    %c0_i32_0 = arith.constant 0 : i32
    %c0_i32_1 = arith.constant 0 : i32
    return %c0_i32, %c0_i32_0 : i32, i32
  }
  func.func @transform_4(%arg0: i32, %arg1: i32) -> (i32, i32, i32) {
    %c0_i32 = arith.constant 0 : i32
    %c0_i32_0 = arith.constant 0 : i32
    return %arg0, %c0_i32, %arg1 : i32, i32, i32
  }
}

</mosaic_0001>

<llo_original>
// kernel: tpu_custom_call.1
$region0: #{tpu_custom_call.1}
  #allocation0 [shape = 'u32[]', space=smem, size = 0x4, offset = 0x4, fixed_abs, tag = 'smem constant byte address 0x4 - core index']
  #allocation1 [shape = 'u32[144,128]{1,0:T(1,128)}', space=vmem, size = 0x12000, scoped, tag = 'internal scratch']
  %s0 = inlined_call_operand.hbm [shape: f32[2,4,256], index: 0, kind: input, shape index: {}]
  %s1 = inlined_call_operand.hbm [shape: f32[2,4,256], index: 1, kind: input, shape index: {}]
  %s2 = inlined_call_operand.vmem [shape: f32[8,8], index: 2, kind: input, shape index: {}]
  %s3 = inlined_call_operand.vmem [shape: f32[8,3], index: 3, kind: input, shape index: {}]
  %s4 = inlined_call_operand.hbm [shape: f32[2,4,256], index: 4, kind: output, shape index: {}]
  %s5 = sld [smem:[#allocation0]]
  $region57: #{tpu_custom_call.1} parent=0
    _
  %s7 = ssub.s32 1, %s5
  %s8 = scalar_select 0, %s7, %s5
  $region1: #{tpu_custom_call.1} parent=0
    #allocation2 [shape = 'u8[4096]{0}', space=vmem, size = 0x1000, scoped, tag = 'input window, operand 0']
    #allocation3 [shape = 's32[2]{0}', space=sflag, size = 0x8, scoped, tag = 'scoped memory for tpu_custom_call.1']
    #allocation4 [shape = 's32[2]{0}', space=sflag, size = 0x8, scoped, tag = 'scoped memory for tpu_custom_call.1']
    #allocation5 [shape = 'u8[4096]{0}', space=vmem, size = 0x1000, scoped, tag = 'input window, operand 1']
    #allocation6 [shape = 's32[2]{0}', space=sflag, size = 0x8, scoped, tag = 'scoped memory for tpu_custom_call.1']
    #allocation7 [shape = 'u8[4096]{0}', space=vmem, size = 0x1000, scoped, tag = 'output window, operand 0']
    %9 = vsyncpa [#allocation3], 0
    %s10 = scalar_lea.sflag [#allocation3], 1
    %11 = vsyncpa %s10, 0
    %12 = vsyncpa [#allocation6], 0
    %s13 = scalar_lea.sflag [#allocation6], 1
    %14 = vsyncpa %s13, 0
    %15 = vsyncpa [#allocation4], 0
    %s16 = scalar_lea.sflag [#allocation4], 1
    %17 = vsyncpa %s16, 0
    loop: start=0, step=1, limit=6
    $region2: #{tpu_custom_call.1} parent=1 // loop_pre_header
      _
    $region3: #{tpu_custom_call.1} parent=1 // loop_header
      %s19 = sphi 0, %s23
      %p20 = scmp.ge.s32.totalorder %s19, 6
      %s26 = sphi 0, %s38
      %s27 = sphi 0, %s34
      %s28 = sphi 0, %s26
      %s29 = sphi 0, %s27
      %s30 = sphi 0, %s28
      %s31 = sphi 0, %s29
      %s43 = sphi 0, %s45
      %s46 = sphi 0, %s43
      %s47 = sphi 0, %s46
      %s63 = sphi 0, %s47
      %s71 = sphi 0, %s73
      %s74 = sphi 0, %s71
      %s75 = sphi 0, %s74
      %s91 = sphi 0, %s75
      %s95 = sphi 0, %s95
      %s97 = sphi 0, %s95
      %s98 = sphi 0, %s97
      %s112 = sphi 0, %s98
      %s116 = sphi 0, %s116
      %s118 = sphi 0, %s116
      %s119 = sphi 0, %s118
      %s133 = sphi 0, %s119
      %s141 = sphi 0, %s143
      %s144 = sphi 0, %s141
      %s145 = sphi 0, %s144
      %s161 = sphi 0, %s145
    $region4: #{tpu_custom_call.1} parent=1 // loop_header_branch
      %22 = sbr.rel (%p20) target = $region8
    $region5: #{tpu_custom_call.1} parent=1 // loop_body
      %s24 = ssub.s32 %s19, 1
      %s25 = ssub.s32 %s19, 2
      %s32 = sadd.s32 1, %s27
      %p33 = scmp.ge.s32.totalorder %s32, 2
      %s34 = scalar_select %p33, 0, %s32
      %s35 = sadd.s32 1, %s26
      %s36 = scalar_select %p33, %s35, %s26
      %p37 = scmp.ge.s32.totalorder %s36, 2
      %s38 = scalar_select %p37, 0, %s36
      %s39 = ssub.s32 %s26, %s38
      %s40 = ssub.s32 %s27, %s34
      %s41 = sor.u32 %s39, %s40
      %p42 = scmp.eq.s32.totalorder %s41, 0
      %s44 = sadd.s32 %s43, 1
      %s45 = scalar_select %p42, %s43, %s44
      %p48 = pneg %p42
      %p49 = scmp.eq.s32.totalorder %s19, 3
      %p50 = por %p48, %p49
      %p51 = scmp.ne.s32.totalorder %s43, %s46
      %p52 = scmp.eq.s32.totalorder %s19, 0
      %p53 = por %p51, %p52
      %p54 = scmp.ne.s32.totalorder %s43, %s46
      %p55 = scmp.eq.s32.totalorder %s24, 3
      %p56 = por %p54, %p55
      %p57 = scmp.ne.s32.totalorder %s46, %s47
      %p58 = scmp.eq.s32.totalorder %s24, 0
      %p59 = por %p57, %p58
      %p60 = scmp.ne.s32.totalorder %s46, %s47
      %p61 = scmp.eq.s32.totalorder %s25, 3
      %p62 = por %p60, %p61
      %p64 = scmp.ne.s32.totalorder %s47, %s63
      %p65 = scmp.eq.s32.totalorder %s25, 0
      %p66 = por %p64, %p65
      %s67 = ssub.s32 %s26, %s38
      %s68 = ssub.s32 %s27, %s34
      %s69 = sor.u32 %s67, %s68
      %p70 = scmp.eq.s32.totalorder %s69, 0
      %s72 = sadd.s32 %s71, 1
      %s73 = scalar_select %p70, %s71, %s72
      %p76 = pneg %p70
      %p77 = scmp.eq.s32.totalorder %s19, 3
      %p78 = por %p76, %p77
      %p79 = scmp.ne.s32.totalorder %s71, %s74
      %p80 = scmp.eq.s32.totalorder %s19, 0
      %p81 = por %p79, %p80
      %p82 = scmp.ne.s32.totalorder %s71, %s74
      %p83 = scmp.eq.s32.totalorder %s24, 3
      %p84 = por %p82, %p83
      %p85 = scmp.ne.s32.totalorder %s74, %s75
      %p86 = scmp.eq.s32.totalorder %s24, 0
      %p87 = por %p85, %p86
      %p88 = scmp.ne.s32.totalorder %s74, %s75
      %p89 = scmp.eq.s32.totalorder %s25, 3
      %p90 = por %p88, %p89
      %p92 = scmp.ne.s32.totalorder %s75, %s91
      %p93 = scmp.eq.s32.totalorder %s25, 0
      %p94 = por %p92, %p93
      %s96 = sadd.s32 %s95, 1
      %p99 = scmp.eq.s32.totalorder %s19, 3
      %p100 = scmp.ne.s32.totalorder %s95, %s97
      %p101 = scmp.eq.s32.totalorder %s19, 0
      %p102 = por %p100, %p101
      %p103 = scmp.ne.s32.totalorder %s95, %s97
      %p104 = scmp.eq.s32.totalorder %s24, 3
      %p105 = por %p103, %p104
      %p106 = scmp.ne.s32.totalorder %s97, %s98
      %p107 = scmp.eq.s32.totalorder %s24, 0
      %p108 = por %p106, %p107
      %p109 = scmp.ne.s32.totalorder %s97, %s98
      %p110 = scmp.eq.s32.totalorder %s25, 3
      %p111 = por %p109, %p110
      %p113 = scmp.ne.s32.totalorder %s98, %s112
      %p114 = scmp.eq.s32.totalorder %s25, 0
      %p115 = por %p113, %p114
      %s117 = sadd.s32 %s116, 1
      %p120 = scmp.eq.s32.totalorder %s19, 3
      %p121 = scmp.ne.s32.totalorder %s116, %s118
      %p122 = scmp.eq.s32.totalorder %s19, 0
      %p123 = por %p121, %p122
      %p124 = scmp.ne.s32.totalorder %s116, %s118
      %p125 = scmp.eq.s32.totalorder %s24, 3
      %p126 = por %p124, %p125
      %p127 = scmp.ne.s32.totalorder %s118, %s119
      %p128 = scmp.eq.s32.totalorder %s24, 0
      %p129 = por %p127, %p128
      %p130 = scmp.ne.s32.totalorder %s118, %s119
      %p131 = scmp.eq.s32.totalorder %s25, 3
      %p132 = por %p130, %p131
      %p134 = scmp.ne.s32.totalorder %s119, %s133
      %p135 = scmp.eq.s32.totalorder %s25, 0
      %p136 = por %p134, %p135
      %s137 = ssub.s32 %s26, %s38
      %s138 = ssub.s32 %s27, %s34
      %s139 = sor.u32 %s137, %s138
      %p140 = scmp.eq.s32.totalorder %s139, 0
      %s142 = sadd.s32 %s141, 1
      %s143 = scalar_select %p140, %s141, %s142
      %p146 = pneg %p140
      %p147 = scmp.eq.s32.totalorder %s19, 3
      %p148 = por %p146, %p147
      %p149 = scmp.ne.s32.totalorder %s141, %s144
      %p150 = scmp.eq.s32.totalorder %s19, 0
      %p151 = por %p149, %p150
      %p152 = scmp.ne.s32.totalorder %s141, %s144
      %p153 = scmp.eq.s32.totalorder %s24, 3
      %p154 = por %p152, %p153
      %p155 = scmp.ne.s32.totalorder %s144, %s145
      %p156 = scmp.eq.s32.totalorder %s24, 0
      %p157 = por %p155, %p156
      %p158 = scmp.ne.s32.totalorder %s144, %s145
      %p159 = scmp.eq.s32.totalorder %s25, 3
      %p160 = por %p158, %p159
      %p162 = scmp.ne.s32.totalorder %s145, %s161
      %p163 = scmp.eq.s32.totalorder %s25, 0
      %p164 = por %p162, %p163
      %p165 = scmp.le.s32.totalorder 1, %s19
      %p166 = scmp.lt.s32.totalorder %s19, 5
      %p167 = pnand %p165, %p166
      %p168 = pneg %p167
      // Predicated region
      $region9: #{tpu_custom_call.1} parent=5 // pred_check
        _
      $region10: #{tpu_custom_call.1} parent=5 // pred_check_branch
        %170 = sbr.rel (%p167) target = $region12
      $region11: #{tpu_custom_call.1} parent=5 // pred_region
        %s171 = ssub.s32 %s19, 1
        // Predicated region
        $region13: #{tpu_custom_call.1} parent=11 // pred_check
          %p172 = pneg %p108
        $region14: #{tpu_custom_call.1} parent=11 // pred_check_branch
          %174 = sbr.rel (%p172) target = $region16
        $region15: #{tpu_custom_call.1} parent=11 // pred_region
          _
        $region16: #{tpu_custom_call.1} parent=11 // pred_fallthru
          _
        // Predicated region
        $region17: #{tpu_custom_call.1} parent=11 // pred_check
          %p175 = pneg %p129
        $region18: #{tpu_custom_call.1} parent=11 // pred_check_branch
          %177 = sbr.rel (%p175) target = $region20
        $region19: #{tpu_custom_call.1} parent=11 // pred_region
          _
        $region20: #{tpu_custom_call.1} parent=11 // pred_fallthru
          _
      $region12: #{tpu_custom_call.1} parent=5 // pred_fallthru
        _
      %p178 = scmp.lt.s32.totalorder %s19, 4
      // Predicated region
      $region21: #{tpu_custom_call.1} parent=5 // pred_check
        %p179 = pneg %p178
      $region22: #{tpu_custom_call.1} parent=5 // pred_check_branch
        %181 = sbr.rel (%p179) target = $region24
      $region23: #{tpu_custom_call.1} parent=5 // pred_region
        // Predicated region
        $region25: #{tpu_custom_call.1} parent=23 // pred_check
          %p182 = pneg %p53
        $region26: #{tpu_custom_call.1} parent=23 // pred_check_branch
          %184 = sbr.rel (%p182) target = $region28
        $region27: #{tpu_custom_call.1} parent=23 // pred_region
          %s185 = sand.u32 %s43, 1
          %s186 = scalar_lea.sflag [#allocation3], %s185
          %s187 = sand.u32 %s43, 1
          %s188 = smul.addr %s187, 4
          %s189 = scalar_lea.vmem [#allocation2], %s188
          %s191 = ssub.s32 64, 64
          %192 = vsyncadd %s186, %s191
          %s193 = smul.addr %s26, 2
          %s194 = sadd.s32 %s27, %s193
          %s195 = smul.addr %s194, 64
          %s196 = scalar_lea.hbm %s0, %s195
          %s198 = sshll.u32 %s189, 4
          %s199 = int_to_ptr.vmem [resolvable:$true] %s198
          %201 = dma.hbm_to_vmem [thread:$0]  %s196, 64, %s199, %s186
        $region28: #{tpu_custom_call.1} parent=23 // pred_fallthru
          _
        // Predicated region
        $region29: #{tpu_custom_call.1} parent=23 // pred_check
          %p202 = pneg %p81
        $region30: #{tpu_custom_call.1} parent=23 // pred_check_branch
          %204 = sbr.rel (%p202) target = $region32
        $region31: #{tpu_custom_call.1} parent=23 // pred_region
          %s205 = sand.u32 %s71, 1
          %s206 = scalar_lea.sflag [#allocation6], %s205
          %s207 = sand.u32 %s71, 1
          %s208 = smul.addr %s207, 4
          %s209 = scalar_lea.vmem [#allocation5], %s208
          %s211 = ssub.s32 64, 64
          %212 = vsyncadd %s206, %s211
          %s213 = smul.addr %s26, 2
          %s214 = sadd.s32 %s27, %s213
          %s215 = smul.addr %s214, 64
          %s216 = scalar_lea.hbm %s1, %s215
          %s218 = sshll.u32 %s209, 4
          %s219 = int_to_ptr.vmem [resolvable:$true] %s218
          %221 = dma.hbm_to_vmem [thread:$0]  %s216, 64, %s219, %s206
        $region32: #{tpu_custom_call.1} parent=23 // pred_fallthru
          _
      $region24: #{tpu_custom_call.1} parent=5 // pred_fallthru
        _
      %p222 = scmp.le.s32.totalorder 1, %s19
      %p223 = scmp.lt.s32.totalorder %s19, 5
      %p224 = pnand %p222, %p223
      %p225 = pneg %p224
      // Predicated region
      $region33: #{tpu_custom_call.1} parent=5 // pred_check
        _
      $region34: #{tpu_custom_call.1} parent=5 // pred_check_branch
        %227 = sbr.rel (%p224) target = $region36
      $region35: #{tpu_custom_call.1} parent=5 // pred_region
        %s228 = ssub.s32 %s19, 1
        %s229 = sand.u32 %s46, 1
        %s230 = scalar_lea.sflag [#allocation3], %s229
        %s231 = sand.u32 %s46, 1
        %s232 = smul.addr %s231, 4
        %s233 = scalar_lea.vmem [#allocation2], %s232
        // Predicated region
        $region37: #{tpu_custom_call.1} parent=35 // pred_check
          %p234 = pneg %p59
        $region38: #{tpu_custom_call.1} parent=35 // pred_check_branch
          %236 = sbr.rel (%p234) target = $region40
        $region39: #{tpu_custom_call.1} parent=35 // pred_region
          %237 = dma.done %s230, 64
        $region40: #{tpu_custom_call.1} parent=35 // pred_fallthru
          _
        %s238 = sand.u32 %s74, 1
        %s239 = scalar_lea.sflag [#allocation6], %s238
        %s240 = sand.u32 %s74, 1
        %s241 = smul.addr %s240, 4
        %s242 = scalar_lea.vmem [#allocation5], %s241
        // Predicated region
        $region41: #{tpu_custom_call.1} parent=35 // pred_check
          %p243 = pneg %p87
        $region42: #{tpu_custom_call.1} parent=35 // pred_check_branch
          %245 = sbr.rel (%p243) target = $region44
        $region43: #{tpu_custom_call.1} parent=35 // pred_region
          %246 = dma.done %s239, 64
        $region44: #{tpu_custom_call.1} parent=35 // pred_fallthru
          _
        %s247 = sand.u32 %s46, 1
        %s248 = scalar_lea.sflag [#allocation3], %s247
        %s249 = sand.u32 %s46, 1
        %s250 = smul.addr %s249, 4
        %s251 = scalar_lea.vmem [#allocation2], %s250
        %p252 = pneg %p59
        %p253 = pneg %p56
        %s254 = sand.u32 %s74, 1
        %s255 = scalar_lea.sflag [#allocation6], %s254
        %s256 = sand.u32 %s74, 1
        %s257 = smul.addr %s256, 4
        %s258 = scalar_lea.vmem [#allocation5], %s257
        %p259 = pneg %p87
        %p260 = pneg %p84
        %p261 = pneg %p108
        %p262 = pneg %p105
        %p263 = pneg %p129
        %p264 = pneg %p126
        %p265 = pneg %p157
        %p266 = pneg %p154
        %s267 = sand.u32 %s144, 1
        %s268 = scalar_lea.sflag [#allocation4], %s267
        %s269 = sand.u32 %s144, 1
        %s270 = smul.addr %s269, 4
        %s271 = scalar_lea.vmem [#allocation7], %s270
        %v272 = vld [vmem:[%s233] sm:$0xf]
        %v273 = vld [vmem:[%s242] sm:$0xf]
        %v274 = vld [vmem:[%s2] sm:$0xff]
        %276 = vset.pattern.permute.xlu0 0
        %277 = vperm.xlu0 %276, %v274
        %v278 = vpop.permute.xlu0 %277
        %v280 = vlaneseq
        %v281 = vshrl.u32 %v280, 7
        %v282 = vsub.s32 0, %v281
        %v283 = vrot.slane %v272, %v282
        %v284 = vmul.f32 %v278, %v283
        %285 = vset.pattern.permute.xlu0 1
        %286 = vperm.xlu0 %285, %v274
        %v287 = vpop.permute.xlu0 %286
        %v289 = vlaneseq
        %v290 = vshrl.u32 %v289, 7
        %v291 = vsub.s32 1, %v290
        %v292 = vrot.slane %v272, %v291
        %v293 = vmul.f32 %v287, %v292
        %v294 = vadd.f32 %v284, %v293
        %295 = vset.pattern.permute.xlu0 2
        %296 = vperm.xlu0 %295, %v274
        %v297 = vpop.permute.xlu0 %296
        %v299 = vlaneseq
        %v300 = vshrl.u32 %v299, 7
        %v301 = vsub.s32 2, %v300
        %v302 = vrot.slane %v272, %v301
        %v303 = vmul.f32 %v297, %v302
        %v304 = vadd.f32 %v294, %v303
        %305 = vset.pattern.permute.xlu0 3
        %306 = vperm.xlu0 %305, %v274
        %v307 = vpop.permute.xlu0 %306
        %v309 = vlaneseq
        %v310 = vshrl.u32 %v309, 7
        %v311 = vsub.s32 3, %v310
        %v312 = vrot.slane %v272, %v311
        %v313 = vmul.f32 %v307, %v312
        %v314 = vadd.f32 %v304, %v313
        %315 = vset.pattern.permute.xlu0 4
        %316 = vperm.xlu0 %315, %v274
        %v317 = vpop.permute.xlu0 %316
        %v319 = vlaneseq
        %v320 = vshrl.u32 %v319, 7
        %v321 = vsub.s32 0, %v320
        %v322 = vrot.slane %v273, %v321
        %v323 = vmul.f32 %v317, %v322
        %v324 = vadd.f32 %v314, %v323
        %325 = vset.pattern.permute.xlu0 5
        %326 = vperm.xlu0 %325, %v274
        %v327 = vpop.permute.xlu0 %326
        %v329 = vlaneseq
        %v330 = vshrl.u32 %v329, 7
        %v331 = vsub.s32 1, %v330
        %v332 = vrot.slane %v273, %v331
        %v333 = vmul.f32 %v327, %v332
        %v334 = vadd.f32 %v324, %v333
        %335 = vset.pattern.permute.xlu0 6
        %336 = vperm.xlu0 %335, %v274
        %v337 = vpop.permute.xlu0 %336
        %v339 = vlaneseq
        %v340 = vshrl.u32 %v339, 7
        %v341 = vsub.s32 2, %v340
        %v342 = vrot.slane %v273, %v341
        %v343 = vmul.f32 %v337, %v342
        %v344 = vadd.f32 %v334, %v343
        %345 = vset.pattern.permute.xlu0 7
        %346 = vperm.xlu0 %345, %v274
        %v347 = vpop.permute.xlu0 %346
        %v349 = vlaneseq
        %v350 = vshrl.u32 %v349, 7
        %v351 = vsub.s32 3, %v350
        %v352 = vrot.slane %v273, %v351
        %v353 = vmul.f32 %v347, %v352
        %v354 = vadd.f32 %v344, %v353
        %v355 = vld [vmem:[%s3] sm:$0xff]
        %v356 = vld [vmem:[%s3] sm:$0x1]
        %358 = vset.pattern.permute.xlu0 0
        %359 = vperm.xlu0 %358, %v355
        %v360 = vpop.permute.xlu0 %359
        %v362 = vadd.f32 %v354, %v360
        %v363 = vmax.f32 %v362, 0.0
        %364 = vset.pattern.permute.xlu0 1
        %365 = vperm.xlu0 %364, %v355
        %v366 = vpop.permute.xlu0 %365
        %v368 = vmul.f32 %v363, %v366
        %v369 = vrot.slane %v368, 4
        %v370 = vadd.f32 %v368, %v369
        %v371 = vrot.slane %v370, 2
        %v372 = vadd.f32 %v370, %v371
        %v373 = vrot.slane %v372, 1
        %v374 = vadd.f32 %v372, %v373
        %376 = vset.pattern.permute.xlu0 2
        %377 = vperm.xlu0 %376, %v356
        %v378 = vpop.permute.xlu0 %377
        %v380 = vadd.f32 %v374, %v378
        %v381 = vsub.f32 0.0, %v380
        %v382 = vmul.f32 %v381, 1.442695
        %v383 = vpow.pop %v382
        %v384 = vadd.f32 %v383, 1.0
        %v385 = vrcp.pop %v384
        %v386 = vlaneseq
        %v387 = vshrl.u32 %v386, 7
        %v388 = vsub.s32 0, %v387
        %v389 = vrot.slane %v385, %v388
        %v390 = vmul.f32 %v273, %v389
        %391 = vst [vmem:[%s271] sm:$0xf] %v390
        %s392 = sand.u32 %s144, 1
        %s393 = scalar_lea.sflag [#allocation4], %s392
        %s394 = sand.u32 %s144, 1
        %s395 = smul.addr %s394, 4
        %s396 = scalar_lea.vmem [#allocation7], %s395
        // Predicated region
        $region45: #{tpu_custom_call.1} parent=35 // pred_check
          %p397 = pneg %p154
        $region46: #{tpu_custom_call.1} parent=35 // pred_check_branch
          %399 = sbr.rel (%p397) target = $region48
        $region47: #{tpu_custom_call.1} parent=35 // pred_region
          %s401 = ssub.s32 64, 64
          %402 = vsyncadd %s393, %s401
          %s403 = smul.addr %s28, 2
          %s404 = sadd.s32 %s29, %s403
          %s405 = smul.addr %s404, 64
          %s406 = scalar_lea.hbm %s4, %s405
          %s408 = sshll.u32 %s396, 4
          %s409 = int_to_ptr.vmem [resolvable:$true] %s408
          %411 = dma.vmem_to_hbm [thread:$0]  %s409, 64, %s406, %s393
        $region48: #{tpu_custom_call.1} parent=35 // pred_fallthru
          _
      $region36: #{tpu_custom_call.1} parent=5 // pred_fallthru
        _
      %p412 = scmp.le.s32.totalorder 2, %s19
      // Predicated region
      $region49: #{tpu_custom_call.1} parent=5 // pred_check
        %p413 = pneg %p412
      $region50: #{tpu_custom_call.1} parent=5 // pred_check_branch
        %415 = sbr.rel (%p413) target = $region52
      $region51: #{tpu_custom_call.1} parent=5 // pred_region
        %s416 = ssub.s32 %s19, 2
        // Predicated region
        $region53: #{tpu_custom_call.1} parent=51 // pred_check
          %p417 = pneg %p160
        $region54: #{tpu_custom_call.1} parent=51 // pred_check_branch
          %419 = sbr.rel (%p417) target = $region56
        $region55: #{tpu_custom_call.1} parent=51 // pred_region
          %s420 = sand.u32 %s145, 1
          %s421 = scalar_lea.sflag [#allocation4], %s420
          %s422 = sand.u32 %s145, 1
          %s423 = smul.addr %s422, 4
          %s424 = scalar_lea.vmem [#allocation7], %s423
          %425 = dma.done %s421, 64
        $region56: #{tpu_custom_call.1} parent=51 // pred_fallthru
          _
      $region52: #{tpu_custom_call.1} parent=5 // pred_fallthru
        _
    $region6: #{tpu_custom_call.1} parent=1 // loop_footer
      %s23 = sadd.s32 1, %s19
    $region7: #{tpu_custom_call.1} parent=1 // loop_footer_branch
      %18 = sbr.rel target = $region3
    $region8: #{tpu_custom_call.1} parent=1 // loop_exit
      _
    %426 = vsyncpa [#allocation3], 1
    %s427 = scalar_lea.sflag [#allocation3], 1
    %428 = vsyncpa %s427, 1
    %429 = vsyncpa [#allocation6], 1
    %s430 = scalar_lea.sflag [#allocation6], 1
    %431 = vsyncpa %s430, 1
    %432 = vsyncpa [#allocation4], 1
    %s433 = scalar_lea.sflag [#allocation4], 1
    %434 = vsyncpa %s433, 1

</llo_original>
